<compile_context>
chip_gen: v7x
topology: tpu7x:2x2x1
jax: 0.10.0
libtpu: 0.0.40
codegen_flags: <defaults>
</compile_context>

<pallas_src>
import jax
import jax.numpy as jnp
from jax.experimental import pallas as pl
from jax.experimental.pallas import tpu as pltpu

IN_DIM = 100
HID_DIM = 10
HEAD_DIMS = {"turn": 2, "pitch": 2, "accel": 2, "fire": 2, "value": 1}
HEADS_TOTAL = sum(HEAD_DIMS.values())  # 9

# Default batch tile: 4096 rows -> x tile = 4096*100*4 B = 1.6 MiB, double
# buffered ~= 3.2 MiB.  Fits comfortably inside the scoped-VMEM default on
# v5e/v6e (128 MiB physical) and v7x (64 MiB physical), while being large
# enough (>=512 rows) to hit the ~85% HBM-roofline plateau and amortize the
# ~0.35 us per-grid-step overhead.
DEFAULT_TILE_B = 4096


def _round_up(n, m):
    return ((n + m - 1) // m) * m


def fightnet_kernel(x_ref, w_ref, b_ref, out_ref):
    # x_ref:  [TILE_B, 100]   w_ref: [100, 9]   b_ref: [1, 9]
    # out_ref: [TILE_B, 9]
    out_ref[...] = (
        jnp.dot(x_ref[...], w_ref[...], preferred_element_type=jnp.float32)
        + b_ref[...]
    ).astype(out_ref.dtype)


def fightnet_forward(x, params, *, tile_b=DEFAULT_TILE_B):
    """x: [B, 100] float32. params: dict from init_params (pre-transposed weights)."""
    B = x.shape[0]
    wd, bd, wh, bh = params["wd"], params["bd"], params["wh"], params["bh"]

    # Fold the two linears (exact: no nonlinearity in between).  Tiny [100,10]
    # x [10,9] matmul, done once in JAX outside the kernel.
    w_comb = wd @ wh          # [100, 9]
    b_comb = bd @ wh + bh     # [1, 9]

    # Batch tile: multiple of 8 (f32 sublane), no larger than needed for small B.
    tb = max(8, min(tile_b, _round_up(max(B, 1), 8)))
    tb = (tb // 8) * 8
    b_pad = _round_up(max(B, 1), tb)
    if b_pad != B:
        x = jnp.pad(x, ((0, b_pad - B), (0, 0)))

    grid = (b_pad // tb,)

    cost = pl.CostEstimate(
        flops=2 * b_pad * IN_DIM * HEADS_TOTAL,
        transcendentals=0,
        bytes_accessed=(
            b_pad * (IN_DIM + HEADS_TOTAL) * 4
            + w_comb.size * 4
            + b_comb.size * 4
        ),
    )

    out = pl.pallas_call(
        fightnet_kernel,
        out_shape=jax.ShapeDtypeStruct((b_pad, HEADS_TOTAL), jnp.float32),
        grid=grid,
        in_specs=[
            # x: tiled along batch, double-buffered by Pallas.
            pl.BlockSpec((tb, IN_DIM), lambda i: (i, 0)),
            # Folded weight / bias: resident across all grid steps.
            pl.BlockSpec((IN_DIM, HEADS_TOTAL), lambda i: (0, 0)),
            pl.BlockSpec((1, HEADS_TOTAL), lambda i: (0, 0)),
        ],
        out_specs=pl.BlockSpec((tb, HEADS_TOTAL), lambda i: (i, 0)),
        compiler_params=pltpu.CompilerParams(
            dimension_semantics=("parallel",),  # megacore sharding on v7x
        ),
        cost_estimate=cost,
    )(x, w_comb, b_comb)

    out = out[:B]

    # Glue: split the fused head output back into the PyTorch dict.
    result = {}
    off = 0
    for name, d in HEAD_DIMS.items():
        result[name] = out[:, off:off + d]
        off += d
    return result


def init_params(key):
    """Deterministic synthetic weights matching nn.Linear shapes (pre-transposed)."""
    ks = jax.random.split(key, 12)

    def linear(kw, kb, fan_in, fan_out):
        # PyTorch nn.Linear default init: U(-1/sqrt(fan_in), 1/sqrt(fan_in))
        bound = 1.0 / jnp.sqrt(float(fan_in))
        w = jax.random.uniform(kw, (fan_in, fan_out), jnp.float32, -bound, bound)
        b = jax.random.uniform(kb, (1, fan_out), jnp.float32, -bound, bound)
        return w, b

    wd, bd = linear(ks[0], ks[1], IN_DIM, HID_DIM)
    head_ws, head_bs = [], []
    for i, (_, d) in enumerate(HEAD_DIMS.items()):
        w, b = linear(ks[2 + 2 * i], ks[3 + 2 * i], HID_DIM, d)
        head_ws.append(w)
        head_bs.append(b)
    wh = jnp.concatenate(head_ws, axis=1)  # [10, 9]
    bh = jnp.concatenate(head_bs, axis=1)  # [1, 9]
    return {"wd": wd, "bd": bd, "wh": wh, "bh": bh}


def reference_forward(x, params):
    """Pure-JAX two-step reference (matches the PyTorch module exactly)."""
    h = x @ params["wd"] + params["bd"]
    out = h @ params["wh"] + params["bh"]
    result = {}
    off = 0
    for name, d in HEAD_DIMS.items():
        result[name] = out[:, off:off + d]
        off += d
    return result


if __name__ == "__main__":
    key = jax.random.PRNGKey(0)
    k_params, k_x = jax.random.split(key)

    B = 2
    x = jax.random.normal(k_x, (B, IN_DIM), jnp.float32)
    params = init_params(k_params)

    out = fightnet_forward(x, params)
    out = jax.block_until_ready(out)

    ref = reference_forward(x, params)
    for name in HEAD_DIMS:
        assert out[name].shape == ref[name].shape, name
        assert jnp.allclose(out[name], ref[name], atol=1e-5, rtol=1e-5), name

    # Also exercise a batch large enough to use the batch grid (multiple tiles).
    B2 = 8192 + 40  # non-multiple of the tile to exercise padding
    x2 = jax.random.normal(jax.random.PRNGKey(1), (B2, IN_DIM), jnp.float32)
    out2 = jax.block_until_ready(fightnet_forward(x2, params, tile_b=2048))
    ref2 = reference_forward(x2, params)
    for name in HEAD_DIMS:
        assert jnp.allclose(out2[name], ref2[name], atol=1e-4, rtol=1e-4), name

    print("KERNEL_OK")
</pallas_src>

<mosaic_0001>
module attributes {stable_mosaic.version = 11 : i64} {
  func.func @fightnet_kernel(%arg0: i32, %arg1: memref<8x100xf32, #tpu.memory_space<vmem>>, %arg2: memref<100x9xf32, #tpu.memory_space<vmem>>, %arg3: memref<1x9xf32, #tpu.memory_space<vmem>>, %arg4: memref<8x9xf32, #tpu.memory_space<vmem>>) attributes {dimension_semantics = [#tpu.dimension_semantics<parallel>], iteration_bounds = array<i64: 1>, scalar_prefetch = 0 : i64, scratch_operands = 0 : i64, tpu.core_type = #tpu.core_type<tc>, window_params = [{transform_indices = @transform_0, window_bounds = array<i64: 8, 100>}, {pipeline_mode = #tpu.pipeline_mode<synchronous>, transform_indices = @transform_1, window_bounds = array<i64: 100, 9>}, {pipeline_mode = #tpu.pipeline_mode<synchronous>, transform_indices = @transform_2, window_bounds = array<i64: 1, 9>}, {transform_indices = @transform_3, window_bounds = array<i64: 8, 9>}]} {
    %c0 = arith.constant 0 : index
    %c0_0 = arith.constant 0 : index
    %0 = vector.load %arg1[%c0, %c0_0] : memref<8x100xf32, #tpu.memory_space<vmem>>, vector<8x100xf32>
    %c0_1 = arith.constant 0 : index
    %c0_2 = arith.constant 0 : index
    %1 = vector.load %arg2[%c0_1, %c0_2] : memref<100x9xf32, #tpu.memory_space<vmem>>, vector<100x9xf32>
    %cst = arith.constant dense<0.000000e+00> : vector<8x9xf32>
    %2 = tpu.matmul %0, %1, %cst {dimension_numbers = #tpu.dot_dimension_numbers<[1], [0], [0], [1], [0, 0, 1, 1], [], []>} : vector<8x100xf32>, vector<100x9xf32>, vector<8x9xf32> -> vector<8x9xf32>
    %c0_3 = arith.constant 0 : index
    %c0_4 = arith.constant 0 : index
    %3 = vector.load %arg3[%c0_3, %c0_4] : memref<1x9xf32, #tpu.memory_space<vmem>>, vector<1x9xf32>
    %4 = vector.broadcast %3 : vector<1x9xf32> to vector<8x9xf32>
    %5 = arith.addf %2, %4 : vector<8x9xf32>
    %c0_5 = arith.constant 0 : index
    %c0_6 = arith.constant 0 : index
    %6 = vector.load %arg4[%c0_5, %c0_6] : memref<8x9xf32, #tpu.memory_space<vmem>>, vector<8x9xf32>
    tpu.vector_store %arg4[%c0_5, %c0_6], %5 {strides = array<i32>} : memref<8x9xf32, #tpu.memory_space<vmem>>, vector<8x9xf32>,
    return
  }
  func.func @transform_0(%arg0: i32) -> (i32, i32) {
    %c0_i32 = arith.constant 0 : i32
    %c0_i32_0 = arith.constant 0 : i32
    return %arg0, %c0_i32 : i32, i32
  }
  func.func @transform_1(%arg0: i32) -> (i32, i32) {
    %c0_i32 = arith.constant 0 : i32
    %c0_i32_0 = arith.constant 0 : i32
    %c0_i32_1 = arith.constant 0 : i32
    return %c0_i32, %c0_i32_0 : i32, i32
  }
  func.func @transform_2(%arg0: i32) -> (i32, i32) {
    %c0_i32 = arith.constant 0 : i32
    %c0_i32_0 = arith.constant 0 : i32
    %c0_i32_1 = arith.constant 0 : i32
    return %c0_i32, %c0_i32_0 : i32, i32
  }
  func.func @transform_3(%arg0: i32) -> (i32, i32) {
    %c0_i32 = arith.constant 0 : i32
    %c0_i32_0 = arith.constant 0 : i32
    return %arg0, %c0_i32 : i32, i32
  }
}

</mosaic_0001>

<llo_original>
// kernel: tpu_custom_call.1
$region0: #{tpu_custom_call.1}
  #allocation0 [shape = 'u32[]', space=smem, size = 0x4, offset = 0x4, fixed_abs, tag = 'smem constant byte address 0x4 - core index']
  #allocation1 [shape = 'u32[144,128]{1,0:T(1,128)}', space=vmem, size = 0x12000, scoped, tag = 'internal scratch']
  %s0 = inlined_call_operand.vmem [shape: f32[8,100], index: 0, kind: input, shape index: {}]
  %s1 = inlined_call_operand.vmem [shape: f32[100,9], index: 1, kind: input, shape index: {}]
  %s2 = inlined_call_operand.vmem [shape: f32[1,9], index: 2, kind: input, shape index: {}]
  %s3 = inlined_call_operand.hbm [shape: f32[8,9], index: 3, kind: output, shape index: {}]
  %s4 = sld [smem:[#allocation0]]
  $region22: #{tpu_custom_call.1} parent=0
    _
  %s6 = ssub.s32 1, %s4
  %s7 = scalar_select 0, %s6, %s4
  $region1: #{tpu_custom_call.1} parent=0
    #allocation2 [shape = 'u8[4096]{0}', space=vmem, size = 0x1000, scoped, tag = 'output window, operand 0, single buffered']
    #allocation3 [shape = 's32[1]{0}', space=sflag, size = 0x4, scoped, tag = 'scoped memory for tpu_custom_call.1']
    %8 = vsyncpa [#allocation3], 0
    // Predicated region
    $region2: #{tpu_custom_call.1} parent=1 // pred_check
      _
    $region3: #{tpu_custom_call.1} parent=1 // pred_check_branch
      %10 = sbr.rel (0) target = $region5
    $region4: #{tpu_custom_call.1} parent=1 // pred_region
      _
    $region5: #{tpu_custom_call.1} parent=1 // pred_fallthru
      _
    // Predicated region
    $region6: #{tpu_custom_call.1} parent=1 // pred_check
      _
    $region7: #{tpu_custom_call.1} parent=1 // pred_check_branch
      %12 = sbr.rel (0) target = $region9
    $region8: #{tpu_custom_call.1} parent=1 // pred_region
      _
    $region9: #{tpu_custom_call.1} parent=1 // pred_fallthru
      _
    // Predicated region
    $region10: #{tpu_custom_call.1} parent=1 // pred_check
      _
    $region11: #{tpu_custom_call.1} parent=1 // pred_check_branch
      %14 = sbr.rel (0) target = $region13
    $region12: #{tpu_custom_call.1} parent=1 // pred_region
      _
    $region13: #{tpu_custom_call.1} parent=1 // pred_fallthru
      _
    %v15 = vld [vmem:[%s0] sm:$0xff]
    %v16 = vld [vmem:[%s1] sm:$0xff]
    %v17 = vld [vmem:[%s1 + $0x8] sm:$0xff]
    %v18 = vld [vmem:[%s1 + $0x10] sm:$0xff]
    %v19 = vld [vmem:[%s1 + $0x18] sm:$0xff]
    %v20 = vld [vmem:[%s1 + $0x20] sm:$0xff]
    %v21 = vld [vmem:[%s1 + $0x28] sm:$0xff]
    %v22 = vld [vmem:[%s1 + $0x30] sm:$0xff]
    %v23 = vld [vmem:[%s1 + $0x38] sm:$0xff]
    %v24 = vld [vmem:[%s1 + $0x40] sm:$0xff]
    %v25 = vld [vmem:[%s1 + $0x48] sm:$0xff]
    %v26 = vld [vmem:[%s1 + $0x50] sm:$0xff]
    %v27 = vld [vmem:[%s1 + $0x58] sm:$0xff]
    %v28 = vld [vmem:[%s1 + $0x60] sm:$0xf]
    %v29 = vld [vmem:[%s2] sm:$0x1]
    %v31 = vlaneseq
    %v32 = vshrl.u32 %v31, 7
    %v33 = vsub.s32 0, %v32
    %v34 = vrot.slane %v29, %v33
    %vm36 = vcmask 818176
    %v38 = vsel %vm36, %v15, 0
    %vm40 = vcmask 1043456
    %v42 = vsel %vm40, %v28, 0
    %44 = vmatprep.subr.mxu0 0.0
    %45 = vmatpush1.msra.mxu0 %v16
    %46 = vmatprep.subr.mxu0 0.0
    %47 = vmatpush1.msra.mxu0 %v17
    %48 = vmatprep.subr.mxu0 0.0
    %49 = vmatpush1.msra.mxu0 %v18
    %50 = vmatprep.subr.mxu0 0.0
    %51 = vmatpush1.msra.mxu0 %v19
    %52 = vmatprep.subr.mxu0 0.0
    %53 = vmatpush1.msra.mxu0 %v20
    %54 = vmatprep.subr.mxu0 0.0
    %55 = vmatpush1.msra.mxu0 %v21
    %56 = vmatprep.subr.mxu0 0.0
    %57 = vmatpush1.msra.mxu0 %v22
    %58 = vmatprep.subr.mxu0 0.0
    %59 = vmatpush1.msra.mxu0 %v23
    %60 = vmatprep.subr.mxu0 0.0
    %61 = vmatpush1.msra.mxu0 %v24
    %62 = vmatprep.subr.mxu0 0.0
    %63 = vmatpush1.msra.mxu0 %v25
    %64 = vmatprep.subr.mxu0 0.0
    %65 = vmatpush1.msra.mxu0 %v26
    %66 = vmatprep.subr.mxu0 0.0
    %67 = vmatpush1.msra.mxu0 %v27
    %68 = vmatprep.subr.mxu0 0.0
    %69 = vmatpush1.msra.mxu0 %v42
    %70 = vmatprep.subr.mxu0 0.0
    %71 = vmatpush1.msra.mxu0 0.0
    %72 = vmatprep.subr.mxu0 0.0
    %73 = vmatpush1.msra.mxu0 0.0
    %74 = vmatprep.subr.mxu0 0.0
    %75 = vmatpush1.msra.mxu0 0.0
    %76 = vmatprep.subr.mxu0 0.0
    %77 = vmatpush1.msra.mxu0 0.0
    %78 = vmatprep.subr.mxu0 0.0
    %79 = vmatpush1.msra.mxu0 0.0
    %80 = vmatprep.subr.mxu0 0.0
    %81 = vmatpush1.msra.mxu0 0.0
    %82 = vmatprep.subr.mxu0 0.0
    %83 = vmatpush1.msra.mxu0 0.0
    %84 = vmatprep.subr.mxu0 0.0
    %85 = vmatpush1.msra.mxu0 0.0
    %86 = vmatprep.subr.mxu0 0.0
    %87 = vmatpush1.msra.mxu0 0.0
    %88 = vmatprep.subr.mxu0 0.0
    %89 = vmatpush1.msra.mxu0 0.0
    %90 = vmatprep.subr.mxu0 0.0
    %91 = vmatpush1.msra.mxu0 0.0
    %92 = vmatprep.subr.mxu0 0.0
    %93 = vmatpush1.msra.mxu0 0.0
    %94 = vmatprep.subr.mxu0 0.0
    %95 = vmatpush1.msra.mxu0 0.0
    %96 = vmatprep.subr.mxu0 0.0
    %97 = vmatpush1.msra.mxu0 0.0
    %98 = vmatprep.subr.mxu0 0.0
    %99 = vmatpush1.msra.mxu0 0.0
    %100 = vmatprep.subr.mxu0 0.0
    %101 = vmatpush1.msra.mxu0 0.0
    %102 = vmatprep.subr.mxu0 0.0
    %103 = vmatpush1.msra.mxu0 0.0
    %104 = vmatprep.subr.mxu0 0.0
    %105 = vmatpush1.msra.mxu0 0.0
    %106 = vmatprep.subr.mxu0 0.0
    %107 = vmatpush1.msra.mxu0 0.0
    %108 = vmatprep.mubr.f32.mxu0 0.0
    %109 = vmatmul.mubr.f32.gmra.mrb[0].mxu0 %v38
    %v110 = vpop.f32.mrb[0].mxu0
    %v111 = vadd.f32 %v34, %v110
    %v112 = vpop.f32.mrb[0].mxu0
    %113 = vdwg.mxu0
    %vm114 = vcmask 72704
    %115 = vst.msk [vmem:[#allocation2] sm:$0xff] %vm114, %v111
    // Predicated region
    $region14: #{tpu_custom_call.1} parent=1 // pred_check
      _
    $region15: #{tpu_custom_call.1} parent=1 // pred_check_branch
      %117 = sbr.rel (0) target = $region17
    $region16: #{tpu_custom_call.1} parent=1 // pred_region
      %s119 = ssub.s32 128, 128
      %120 = vsyncadd [#allocation3], %s119
      %s122 = sshll.u32 [#allocation2], 4
      %s123 = int_to_ptr.vmem [resolvable:$true] %s122
      %125 = dma.vmem_to_hbm [thread:$0]  %s123, 128, %s3, [#allocation3]
    $region17: #{tpu_custom_call.1} parent=1 // pred_fallthru
      _
    // Predicated region
    $region18: #{tpu_custom_call.1} parent=1 // pred_check
      _
    $region19: #{tpu_custom_call.1} parent=1 // pred_check_branch
      %127 = sbr.rel (0) target = $region21
    $region20: #{tpu_custom_call.1} parent=1 // pred_region
      %128 = dma.done [#allocation3], 128
    $region21: #{tpu_custom_call.1} parent=1 // pred_fallthru
      _
    %129 = vsyncpa [#allocation3], 1

</llo_original>
